<compile_context>
chip_gen: v5e
topology: v5e:2x2
jax: 0.10.0
libtpu: 0.0.40
codegen_flags: <defaults>
</compile_context>

<pallas_src>
import functools

import jax
import jax.numpy as jnp
from jax import lax
from jax.experimental import pallas as pl
from jax.experimental.pallas import tpu as pltpu


def clencoder_kernel(x_ref, w1_ref, b1_ref, w2_ref, b2_ref, w3_ref, b3_ref, o_ref):
    w_dtype = w1_ref.dtype  # MXU input dtype (f32 or bf16)

    x = x_ref[...]

    # encoder: Linear(input_dim, hidden) + ReLU   (accumulate in f32)
    h = jnp.dot(x, w1_ref[...], preferred_element_type=jnp.float32) + b1_ref[...]
    h = jnp.maximum(h, 0.0)

    # head (mlp): Linear(hidden, hidden) + ReLU
    h = jnp.dot(h.astype(w_dtype), w2_ref[...],
                preferred_element_type=jnp.float32) + b2_ref[...]
    h = jnp.maximum(h, 0.0)

    # head (mlp): Linear(hidden, feat_dim)
    f = jnp.dot(h.astype(w_dtype), w3_ref[...],
                preferred_element_type=jnp.float32) + b3_ref[...]

    # F.normalize(f, dim=1) with eps=1e-12:
    #   f / max(||f||, 1e-12) == f * rsqrt(max(sumsq, 1e-24))
    # rsqrt runs on the EUP slot, keeping the VALU free.
    sumsq = jnp.sum(f * f, axis=1, keepdims=True)
    inv = lax.rsqrt(jnp.maximum(sumsq, 1e-24))
    o_ref[...] = (f * inv).astype(o_ref.dtype)


def _round_up(n, m):
    return ((n + m - 1) // m) * m


def prepare_params(params, compute_dtype=jnp.bfloat16):
    """Pad/cast params ONCE (call at init, not per forward).

    Only the hidden dim is padded to a multiple of 128 (zero rows/cols are
    inert through Linear/ReLU and contribute nothing downstream).  Weights are
    cast to `compute_dtype` (bf16 recommended; f32 for exact semantics);
    biases stay f32 and are added to the f32 accumulator.
    """
    w1, b1, w2, b2, w3, b3 = params
    Din, H = w1.shape
    F = w3.shape[1]
    Hp = _round_up(H, 128)
    cdt = compute_dtype

    w1p = jnp.zeros((Din, Hp), cdt).at[:, :H].set(w1.astype(cdt))
    w2p = jnp.zeros((Hp, Hp), cdt).at[:H, :H].set(w2.astype(cdt))
    w3p = jnp.zeros((Hp, F), cdt).at[:H, :].set(w3.astype(cdt))
    b1p = jnp.zeros((1, Hp), jnp.float32).at[:, :H].set(
        b1.reshape(1, H).astype(jnp.float32))
    b2p = jnp.zeros((1, Hp), jnp.float32).at[:, :H].set(
        b2.reshape(1, H).astype(jnp.float32))
    b3p = b3.reshape(1, F).astype(jnp.float32)
    return (w1p, b1p, w2p, b2p, w3p, b3p)


@functools.partial(jax.jit, static_argnames=("block_rows", "out_dtype"))
def clencoder_forward(x, padded_params, *, block_rows=512, out_dtype=jnp.float32):
    """Fused CLEncoder forward.

    x: (B, input_dim).  padded_params: output of prepare_params().
    Returns (B, feat_dim) in `out_dtype`.
    """
    w1p, b1p, w2p, b2p, w3p, b3p = padded_params
    B, Din = x.shape
    Hp = w1p.shape[1]
    F = w3p.shape[1]

    if B == 0:
        return jnp.zeros((0, F), out_dtype)

    cdt = w1p.dtype
    xk = x if x.dtype == cdt else x.astype(cdt)

    # --- batch tile size ------------------------------------------------
    # Multiple of 16 (bf16 sublane pack; also a multiple of 8 for f32).
    # Clamp so that (a) we never tile far beyond B, and (b) the grid has
    # >= 2 steps whenever the batch allows it, so "parallel" can shard the
    # batch axis across both v7x TensorCores.
    SUB = 16
    desired = max(SUB, _round_up(block_rows, SUB))
    tb_for_two = max(SUB, _round_up(pl.cdiv(B, 2), SUB))
    TB = min(desired, tb_for_two)
    grid = (pl.cdiv(B, TB),)

    # --- VMEM budget / cost hint -----------------------------------------
    wbytes = jnp.dtype(cdt).itemsize
    obytes = jnp.dtype(out_dtype).itemsize
    weight_bytes = (Din * Hp + Hp * Hp + Hp * F) * wbytes + (2 * Hp + F) * 4
    tile_bytes = (2 * TB * _round_up(Din, 128) * wbytes       # x (double-buffered)
                  + 2 * TB * _round_up(F, 128) * obytes       # out (double-buffered)
                  + 3 * TB * Hp * 4)                          # f32 intermediates
    vmem_limit = int(min(64 << 20, max(32 << 20, 2 * (weight_bytes + tile_bytes))))

    flops = 2 * B * (Din * Hp + Hp * Hp + Hp * F)
    bytes_accessed = B * Din * wbytes + weight_bytes + B * F * obytes
    cost = pl.CostEstimate(flops=flops, transcendentals=B,
                           bytes_accessed=bytes_accessed)

    out = pl.pallas_call(
        clencoder_kernel,
        out_shape=jax.ShapeDtypeStruct((B, F), out_dtype),
        grid=grid,
        in_specs=[
            pl.BlockSpec((TB, Din), lambda i: (i, 0)),   # x: streamed per batch tile
            pl.BlockSpec((Din, Hp), lambda i: (0, 0)),   # w1: VMEM-resident
            pl.BlockSpec((1, Hp), lambda i: (0, 0)),     # b1: resident
            pl.BlockSpec((Hp, Hp), lambda i: (0, 0)),    # w2: resident
            pl.BlockSpec((1, Hp), lambda i: (0, 0)),     # b2: resident
            pl.BlockSpec((Hp, F), lambda i: (0, 0)),     # w3: resident
            pl.BlockSpec((1, F), lambda i: (0, 0)),      # b3: resident
        ],
        out_specs=pl.BlockSpec((TB, F), lambda i: (i, 0)),  # true-width store, no slice
        compiler_params=pltpu.CompilerParams(
            dimension_semantics=("parallel",),            # dual-TC on v7x
            vmem_limit_bytes=vmem_limit,
        ),
        cost_estimate=cost,
    )(xk, w1p, b1p, w2p, b2p, w3p, b3p)

    return out


def init_params(key, input_dim, hidden_dim, feat_dim):
    # Deterministic synthetic init (uniform, roughly matching nn.Linear scale).
    ks = jax.random.split(key, 6)

    def lin(kw, kb, fan_in, fan_out):
        bound = 1.0 / jnp.sqrt(fan_in)
        w = jax.random.uniform(kw, (fan_in, fan_out), jnp.float32, -bound, bound)
        b = jax.random.uniform(kb, (1, fan_out), jnp.float32, -bound, bound)
        return w, b

    w1, b1 = lin(ks[0], ks[1], input_dim, hidden_dim)
    w2, b2 = lin(ks[2], ks[3], hidden_dim, hidden_dim)
    w3, b3 = lin(ks[4], ks[5], hidden_dim, feat_dim)
    return (w1, b1, w2, b2, w3, b3)


def clencoder_reference(x, params):
    w1, b1, w2, b2, w3, b3 = params
    h = jnp.maximum(x @ w1 + b1, 0.0)
    h = jnp.maximum(h @ w2 + b2, 0.0)
    f = h @ w3 + b3
    norm = jnp.sqrt(jnp.sum(f * f, axis=1, keepdims=True))
    return f / jnp.maximum(norm, 1e-12)


if __name__ == "__main__":
    # Small shapes consistent with the module's forward (x is (batch, input_dim));
    # input_dim=126 / feat_dim=24 match the module defaults and exercise the
    # non-128-aligned input/output widths.
    B, input_dim, hidden_dim, feat_dim = 8, 126, 64, 24

    key = jax.random.PRNGKey(0)
    kx, kp = jax.random.split(key)
    x = jax.random.normal(kx, (B, input_dim), jnp.float32)
    params = init_params(kp, input_dim, hidden_dim, feat_dim)

    ref = clencoder_reference(x, params)

    # f32 path: exact-semantics check.
    pp_f32 = prepare_params(params, compute_dtype=jnp.float32)
    out = jax.block_until_ready(clencoder_forward(x, pp_f32))
    assert out.shape == (B, feat_dim)
    assert jnp.allclose(out, ref, atol=1e-5, rtol=1e-5), float(jnp.max(jnp.abs(out - ref)))

    # bf16 compute path (recommended perf default: MXU bf16 rate, halved DMA,
    # f32 accumulation): loose tolerance — explicit accuracy/perf trade.
    pp_bf16 = prepare_params(params)  # compute_dtype=bf16 default
    out_bf16 = jax.block_until_ready(clencoder_forward(x, pp_bf16))
    assert out_bf16.shape == (B, feat_dim)
    assert jnp.allclose(out_bf16, ref, atol=7e-2), float(jnp.max(jnp.abs(out_bf16 - ref)))

    print("KERNEL_OK")
</pallas_src>

<mosaic_0001>
module attributes {stable_mosaic.version = 11 : i64} {
  func.func @clencoder_kernel(%arg0: i32, %arg1: memref<16x126xf32, #tpu.memory_space<vmem>>, %arg2: memref<126x128xf32, #tpu.memory_space<vmem>>, %arg3: memref<1x128xf32, #tpu.memory_space<vmem>>, %arg4: memref<128x128xf32, #tpu.memory_space<vmem>>, %arg5: memref<1x128xf32, #tpu.memory_space<vmem>>, %arg6: memref<128x24xf32, #tpu.memory_space<vmem>>, %arg7: memref<1x24xf32, #tpu.memory_space<vmem>>, %arg8: memref<16x24xf32, #tpu.memory_space<vmem>>) attributes {dimension_semantics = [#tpu.dimension_semantics<parallel>], iteration_bounds = array<i64: 1>, scalar_prefetch = 0 : i64, scratch_operands = 0 : i64, tpu.core_type = #tpu.core_type<tc>, window_params = [{transform_indices = @transform_0, window_bounds = array<i64: 16, 126>}, {pipeline_mode = #tpu.pipeline_mode<synchronous>, transform_indices = @transform_1, window_bounds = array<i64: 126, 128>}, {pipeline_mode = #tpu.pipeline_mode<synchronous>, transform_indices = @transform_2, window_bounds = array<i64: 1, 128>}, {pipeline_mode = #tpu.pipeline_mode<synchronous>, transform_indices = @transform_3, window_bounds = array<i64: 128, 128>}, {pipeline_mode = #tpu.pipeline_mode<synchronous>, transform_indices = @transform_4, window_bounds = array<i64: 1, 128>}, {pipeline_mode = #tpu.pipeline_mode<synchronous>, transform_indices = @transform_5, window_bounds = array<i64: 128, 24>}, {pipeline_mode = #tpu.pipeline_mode<synchronous>, transform_indices = @transform_6, window_bounds = array<i64: 1, 24>}, {transform_indices = @transform_7, window_bounds = array<i64: 16, 24>}]} {
    %c0 = arith.constant 0 : index
    %c0_0 = arith.constant 0 : index
    %0 = vector.load %arg1[%c0, %c0_0] : memref<16x126xf32, #tpu.memory_space<vmem>>, vector<16x126xf32>
    %c0_1 = arith.constant 0 : index
    %c0_2 = arith.constant 0 : index
    %1 = vector.load %arg2[%c0_1, %c0_2] : memref<126x128xf32, #tpu.memory_space<vmem>>, vector<126x128xf32>
    %cst = arith.constant dense<0.000000e+00> : vector<16x128xf32>
    %2 = tpu.matmul %0, %1, %cst {dimension_numbers = #tpu.dot_dimension_numbers<[1], [0], [0], [1], [0, 0, 1, 1], [], []>} : vector<16x126xf32>, vector<126x128xf32>, vector<16x128xf32> -> vector<16x128xf32>
    %c0_3 = arith.constant 0 : index
    %c0_4 = arith.constant 0 : index
    %3 = vector.load %arg3[%c0_3, %c0_4] : memref<1x128xf32, #tpu.memory_space<vmem>>, vector<1x128xf32>
    %4 = vector.broadcast %3 : vector<1x128xf32> to vector<16x128xf32>
    %5 = arith.addf %2, %4 : vector<16x128xf32>
    %cst_5 = arith.constant 0.000000e+00 : f32
    %6 = vector.broadcast %cst_5 : f32 to vector<16x128xf32>
    %7 = arith.maximumf %5, %6 : vector<16x128xf32>
    %c0_6 = arith.constant 0 : index
    %c0_7 = arith.constant 0 : index
    %8 = vector.load %arg4[%c0_6, %c0_7] : memref<128x128xf32, #tpu.memory_space<vmem>>, vector<128x128xf32>
    %cst_8 = arith.constant dense<0.000000e+00> : vector<16x128xf32>
    %9 = tpu.matmul %7, %8, %cst_8 {dimension_numbers = #tpu.dot_dimension_numbers<[1], [0], [0], [1], [0, 0, 1, 1], [], []>} : vector<16x128xf32>, vector<128x128xf32>, vector<16x128xf32> -> vector<16x128xf32>
    %c0_9 = arith.constant 0 : index
    %c0_10 = arith.constant 0 : index
    %10 = vector.load %arg5[%c0_9, %c0_10] : memref<1x128xf32, #tpu.memory_space<vmem>>, vector<1x128xf32>
    %11 = vector.broadcast %10 : vector<1x128xf32> to vector<16x128xf32>
    %12 = arith.addf %9, %11 : vector<16x128xf32>
    %cst_11 = arith.constant 0.000000e+00 : f32
    %13 = vector.broadcast %cst_11 : f32 to vector<16x128xf32>
    %14 = arith.maximumf %12, %13 : vector<16x128xf32>
    %c0_12 = arith.constant 0 : index
    %c0_13 = arith.constant 0 : index
    %15 = vector.load %arg6[%c0_12, %c0_13] : memref<128x24xf32, #tpu.memory_space<vmem>>, vector<128x24xf32>
    %cst_14 = arith.constant dense<0.000000e+00> : vector<16x24xf32>
    %16 = tpu.matmul %14, %15, %cst_14 {dimension_numbers = #tpu.dot_dimension_numbers<[1], [0], [0], [1], [0, 0, 1, 1], [], []>} : vector<16x128xf32>, vector<128x24xf32>, vector<16x24xf32> -> vector<16x24xf32>
    %c0_15 = arith.constant 0 : index
    %c0_16 = arith.constant 0 : index
    %17 = vector.load %arg7[%c0_15, %c0_16] : memref<1x24xf32, #tpu.memory_space<vmem>>, vector<1x24xf32>
    %18 = vector.broadcast %17 : vector<1x24xf32> to vector<16x24xf32>
    %19 = arith.addf %16, %18 : vector<16x24xf32>
    %20 = arith.mulf %19, %19 : vector<16x24xf32>
    %cst_17 = arith.constant dense<0.000000e+00> : vector<16xf32>
    %21 = vector.multi_reduction <add>, %20, %cst_17 [1] : vector<16x24xf32> to vector<16xf32>
    %22 = vector.shape_cast %21 : vector<16xf32> to vector<16x1xf32>
    %cst_18 = arith.constant 1.000000e-24 : f32
    %23 = vector.broadcast %cst_18 : f32 to vector<16x1xf32>
    %24 = arith.maximumf %22, %23 : vector<16x1xf32>
    %25 = math.rsqrt %24 : vector<16x1xf32>
    %26 = vector.broadcast %25 : vector<16x1xf32> to vector<16x24xf32>
    %27 = arith.mulf %19, %26 : vector<16x24xf32>
    %c0_19 = arith.constant 0 : index
    %c0_20 = arith.constant 0 : index
    %28 = vector.load %arg8[%c0_19, %c0_20] : memref<16x24xf32, #tpu.memory_space<vmem>>, vector<16x24xf32>
    tpu.vector_store %arg8[%c0_19, %c0_20], %27 {strides = array<i32>} : memref<16x24xf32, #tpu.memory_space<vmem>>, vector<16x24xf32>,
    return
  }
  func.func @transform_0(%arg0: i32) -> (i32, i32) {
    %c0_i32 = arith.constant 0 : i32
    %c0_i32_0 = arith.constant 0 : i32
    return %arg0, %c0_i32 : i32, i32
  }
  func.func @transform_1(%arg0: i32) -> (i32, i32) {
    %c0_i32 = arith.constant 0 : i32
    %c0_i32_0 = arith.constant 0 : i32
    %c0_i32_1 = arith.constant 0 : i32
    return %c0_i32, %c0_i32_0 : i32, i32
  }
  func.func @transform_2(%arg0: i32) -> (i32, i32) {
    %c0_i32 = arith.constant 0 : i32
    %c0_i32_0 = arith.constant 0 : i32
    %c0_i32_1 = arith.constant 0 : i32
    return %c0_i32, %c0_i32_0 : i32, i32
  }
  func.func @transform_3(%arg0: i32) -> (i32, i32) {
    %c0_i32 = arith.constant 0 : i32
    %c0_i32_0 = arith.constant 0 : i32
    %c0_i32_1 = arith.constant 0 : i32
    return %c0_i32, %c0_i32_0 : i32, i32
  }
  func.func @transform_4(%arg0: i32) -> (i32, i32) {
    %c0_i32 = arith.constant 0 : i32
    %c0_i32_0 = arith.constant 0 : i32
    %c0_i32_1 = arith.constant 0 : i32
    return %c0_i32, %c0_i32_0 : i32, i32
  }
  func.func @transform_5(%arg0: i32) -> (i32, i32) {
    %c0_i32 = arith.constant 0 : i32
    %c0_i32_0 = arith.constant 0 : i32
    %c0_i32_1 = arith.constant 0 : i32
    return %c0_i32, %c0_i32_0 : i32, i32
  }
  func.func @transform_6(%arg0: i32) -> (i32, i32) {
    %c0_i32 = arith.constant 0 : i32
    %c0_i32_0 = arith.constant 0 : i32
    %c0_i32_1 = arith.constant 0 : i32
    return %c0_i32, %c0_i32_0 : i32, i32
  }
  func.func @transform_7(%arg0: i32) -> (i32, i32) {
    %c0_i32 = arith.constant 0 : i32
    %c0_i32_0 = arith.constant 0 : i32
    return %arg0, %c0_i32 : i32, i32
  }
}

</mosaic_0001>

<llo_original>
// kernel: clencoder_forward.1
$region0: #{clencoder_forward.1}
  #allocation0 [shape = 'u32[]', space=smem, size = 0x4, offset = 0x4, fixed_abs, tag = 'smem constant byte address 0x4 - core index']
  #allocation1 [shape = 'u32[72,128]{1,0:T(1,128)}', space=vmem, size = 0x9000, scoped, tag = 'internal scratch']
  %s0 = inlined_call_operand.vmem [shape: f32[8,126], index: 0, kind: input, shape index: {}]
  %s1 = inlined_call_operand.vmem [shape: f32[126,128], index: 1, kind: input, shape index: {}]
  %s2 = inlined_call_operand.vmem [shape: f32[1,128], index: 2, kind: input, shape index: {}]
  %s3 = inlined_call_operand.hbm [shape: f32[128,128], index: 3, kind: input, shape index: {}]
  %s4 = inlined_call_operand.vmem [shape: f32[1,128], index: 4, kind: input, shape index: {}]
  %s5 = inlined_call_operand.vmem [shape: f32[128,24], index: 5, kind: input, shape index: {}]
  %s6 = inlined_call_operand.vmem [shape: f32[1,24], index: 6, kind: input, shape index: {}]
  %s7 = inlined_call_operand.hbm [shape: f32[8,24], index: 7, kind: output, shape index: {}]
  %s8 = sld [smem:[#allocation0]]
  $region42: #{clencoder_forward.1} parent=0
    _
  %s10 = ssub.s32 1, %s8
  %s11 = scalar_select 0, %s10, %s8
  $region1: #{clencoder_forward.1} parent=0
    #allocation2 [shape = 'u8[65536]{0}', space=vmem, size = 0x10000, scoped, tag = 'input window, operand 3, single buffered']
    #allocation3 [shape = 's32[1]{0}', space=sflag, size = 0x4, scoped, tag = 'scoped memory for clencoder_forward.1']
    #allocation4 [shape = 's32[1]{0}', space=sflag, size = 0x4, scoped, tag = 'scoped memory for clencoder_forward.1']
    #allocation5 [shape = 'u8[8192]{0}', space=vmem, size = 0x2000, scoped, tag = 'output window, operand 0, single buffered']
    %12 = vsyncpa [#allocation3], 0
    %13 = vsyncpa [#allocation4], 0
    // Predicated region
    $region2: #{clencoder_forward.1} parent=1 // pred_check
      _
    $region3: #{clencoder_forward.1} parent=1 // pred_check_branch
      %15 = sbr.rel (0) target = $region5
    $region4: #{clencoder_forward.1} parent=1 // pred_region
      _
    $region5: #{clencoder_forward.1} parent=1 // pred_fallthru
      _
    // Predicated region
    $region6: #{clencoder_forward.1} parent=1 // pred_check
      _
    $region7: #{clencoder_forward.1} parent=1 // pred_check_branch
      %17 = sbr.rel (0) target = $region9
    $region8: #{clencoder_forward.1} parent=1 // pred_region
      _
    $region9: #{clencoder_forward.1} parent=1 // pred_fallthru
      _
    // Predicated region
    $region10: #{clencoder_forward.1} parent=1 // pred_check
      _
    $region11: #{clencoder_forward.1} parent=1 // pred_check_branch
      %19 = sbr.rel (0) target = $region13
    $region12: #{clencoder_forward.1} parent=1 // pred_region
      _
    $region13: #{clencoder_forward.1} parent=1 // pred_fallthru
      _
    // Predicated region
    $region14: #{clencoder_forward.1} parent=1 // pred_check
      _
    $region15: #{clencoder_forward.1} parent=1 // pred_check_branch
      %21 = sbr.rel (0) target = $region17
    $region16: #{clencoder_forward.1} parent=1 // pred_region
      %23 = vsyncadd [#allocation3], 0
      %s24 = sshll.u32 %s3, 4
      %s25 = int_to_ptr.hbm [resolvable:$true] %s24
      %s26 = sshll.u32 [#allocation2], 4
      %s27 = int_to_ptr.vmem [resolvable:$true] %s26
      %32 = dma.hbm_to_vmem [thread:$0]  %s25, 2048, %s27, [#allocation3], 128, 128, 8
    $region17: #{clencoder_forward.1} parent=1 // pred_fallthru
      _
    // Predicated region
    $region18: #{clencoder_forward.1} parent=1 // pred_check
      _
    $region19: #{clencoder_forward.1} parent=1 // pred_check_branch
      %34 = sbr.rel (0) target = $region21
    $region20: #{clencoder_forward.1} parent=1 // pred_region
      _
    $region21: #{clencoder_forward.1} parent=1 // pred_fallthru
      _
    // Predicated region
    $region22: #{clencoder_forward.1} parent=1 // pred_check
      _
    $region23: #{clencoder_forward.1} parent=1 // pred_check_branch
      %36 = sbr.rel (0) target = $region25
    $region24: #{clencoder_forward.1} parent=1 // pred_region
      _
    $region25: #{clencoder_forward.1} parent=1 // pred_fallthru
      _
    // Predicated region
    $region26: #{clencoder_forward.1} parent=1 // pred_check
      _
    $region27: #{clencoder_forward.1} parent=1 // pred_check_branch
      %38 = sbr.rel (0) target = $region29
    $region28: #{clencoder_forward.1} parent=1 // pred_region
      _
    $region29: #{clencoder_forward.1} parent=1 // pred_fallthru
      _
    // Predicated region
    $region30: #{clencoder_forward.1} parent=1 // pred_check
      _
    $region31: #{clencoder_forward.1} parent=1 // pred_check_branch
      %40 = sbr.rel (0) target = $region33
    $region32: #{clencoder_forward.1} parent=1 // pred_region
      %42 = dma.done [#allocation3], 2048
    $region33: #{clencoder_forward.1} parent=1 // pred_fallthru
      _
    %v43 = vld [vmem:[%s0] sm:$0xff]
    %v44 = vld [vmem:[%s0 + $0x8] sm:$0xff]
    %v45 = vld [vmem:[%s1] sm:$0xff]
    %v46 = vld [vmem:[%s1 + $0x8] sm:$0xff]
    %v47 = vld [vmem:[%s1 + $0x10] sm:$0xff]
    %v48 = vld [vmem:[%s1 + $0x18] sm:$0xff]
    %v49 = vld [vmem:[%s1 + $0x20] sm:$0xff]
    %v50 = vld [vmem:[%s1 + $0x28] sm:$0xff]
    %v51 = vld [vmem:[%s1 + $0x30] sm:$0xff]
    %v52 = vld [vmem:[%s1 + $0x38] sm:$0xff]
    %v53 = vld [vmem:[%s1 + $0x40] sm:$0xff]
    %v54 = vld [vmem:[%s1 + $0x48] sm:$0xff]
    %v55 = vld [vmem:[%s1 + $0x50] sm:$0xff]
    %v56 = vld [vmem:[%s1 + $0x58] sm:$0xff]
    %v57 = vld [vmem:[%s1 + $0x60] sm:$0xff]
    %v58 = vld [vmem:[%s1 + $0x68] sm:$0xff]
    %v59 = vld [vmem:[%s1 + $0x70] sm:$0xff]
    %v60 = vld [vmem:[%s1 + $0x78] sm:$0x3f]
    %v61 = vld [vmem:[%s2] sm:$0x1]
    %v63 = vperm.slane %v61, 0
    %vm65 = vcmask 1031168
    %v67 = vsel %vm65, %v43, 0
    %v70 = vsel %vm65, %v44, 0
    %vm72 = vcmask 1045504
    %v74 = vsel %vm72, %v60, 0
    %76 = vmatpush.msra.mxu0 %v74
    %77 = vmatpush.msra.mxu0 %v59
    %78 = vmatpush.msra.mxu0 %v58
    %79 = vmatpush.msra.mxu0 %v57
    %80 = vmatpush.msra.mxu0 %v56
    %81 = vmatpush.msra.mxu0 %v55
    %82 = vmatpush.msra.mxu0 %v54
    %83 = vmatpush.msra.mxu0 %v53
    %84 = vmatpush.msra.mxu0 %v52
    %85 = vmatpush.msra.mxu0 %v51
    %86 = vmatpush.msra.mxu0 %v50
    %87 = vmatpush.msra.mxu0 %v49
    %88 = vmatpush.msra.mxu0 %v48
    %89 = vmatpush.msra.mxu0 %v47
    %90 = vmatpush.msra.mxu0 %v46
    %91 = vmatpush.msra.mxu0 %v45
    %92 = vmatmul.f32.gmra.mxu0 %v67
    %v93 = vpop.f32.mrf.mxu0
    %v94 = vadd.f32 %v63, %v93
    %95 = vmatmul.f32.gmra.mxu0 %v70
    %v96 = vpop.f32.mrf.mxu0
    %v97 = vadd.f32 %v63, %v96
    %98 = vdwg.mxu0
    %v99 = vmax.f32 %v94, 0.0
    %v100 = vmax.f32 %v97, 0.0
    %v101 = vld [vmem:[#allocation2] sm:$0xff]
    %v102 = vld [vmem:[#allocation2 + $0x8] sm:$0xff]
    %v103 = vld [vmem:[#allocation2 + $0x10] sm:$0xff]
    %v104 = vld [vmem:[#allocation2 + $0x18] sm:$0xff]
    %v105 = vld [vmem:[#allocation2 + $0x20] sm:$0xff]
    %v106 = vld [vmem:[#allocation2 + $0x28] sm:$0xff]
    %v107 = vld [vmem:[#allocation2 + $0x30] sm:$0xff]
    %v108 = vld [vmem:[#allocation2 + $0x38] sm:$0xff]
    %v109 = vld [vmem:[#allocation2 + $0x40] sm:$0xff]
    %v110 = vld [vmem:[#allocation2 + $0x48] sm:$0xff]
    %v111 = vld [vmem:[#allocation2 + $0x50] sm:$0xff]
    %v112 = vld [vmem:[#allocation2 + $0x58] sm:$0xff]
    %v113 = vld [vmem:[#allocation2 + $0x60] sm:$0xff]
    %v114 = vld [vmem:[#allocation2 + $0x68] sm:$0xff]
    %v115 = vld [vmem:[#allocation2 + $0x70] sm:$0xff]
    %v116 = vld [vmem:[#allocation2 + $0x78] sm:$0xff]
    %v117 = vld [vmem:[%s4] sm:$0x1]
    %v119 = vperm.slane %v117, 0
    %121 = vmatpush.msra.mxu0 %v116
    %122 = vmatpush.msra.mxu0 %v115
    %123 = vmatpush.msra.mxu0 %v114
    %124 = vmatpush.msra.mxu0 %v113
    %125 = vmatpush.msra.mxu0 %v112
    %126 = vmatpush.msra.mxu0 %v111
    %127 = vmatpush.msra.mxu0 %v110
    %128 = vmatpush.msra.mxu0 %v109
    %129 = vmatpush.msra.mxu0 %v108
    %130 = vmatpush.msra.mxu0 %v107
    %131 = vmatpush.msra.mxu0 %v106
    %132 = vmatpush.msra.mxu0 %v105
    %133 = vmatpush.msra.mxu0 %v104
    %134 = vmatpush.msra.mxu0 %v103
    %135 = vmatpush.msra.mxu0 %v102
    %136 = vmatpush.msra.mxu0 %v101
    %137 = vmatmul.f32.gmra.mxu0 %v99
    %v138 = vpop.f32.mrf.mxu0
    %v139 = vadd.f32 %v119, %v138
    %140 = vmatmul.f32.gmra.mxu0 %v100
    %v141 = vpop.f32.mrf.mxu0
    %v142 = vadd.f32 %v119, %v141
    %143 = vdwg.mxu0
    %v144 = vmax.f32 %v139, 0.0
    %v145 = vmax.f32 %v142, 0.0
    %v146 = vld [vmem:[%s5] sm:$0xff]
    %v147 = vld [vmem:[%s5 + $0x8] sm:$0xff]
    %v148 = vld [vmem:[%s5 + $0x10] sm:$0xff]
    %v149 = vld [vmem:[%s5 + $0x18] sm:$0xff]
    %v150 = vld [vmem:[%s5 + $0x20] sm:$0xff]
    %v151 = vld [vmem:[%s5 + $0x28] sm:$0xff]
    %v152 = vld [vmem:[%s5 + $0x30] sm:$0xff]
    %v153 = vld [vmem:[%s5 + $0x38] sm:$0xff]
    %v154 = vld [vmem:[%s5 + $0x40] sm:$0xff]
    %v155 = vld [vmem:[%s5 + $0x48] sm:$0xff]
    %v156 = vld [vmem:[%s5 + $0x50] sm:$0xff]
    %v157 = vld [vmem:[%s5 + $0x58] sm:$0xff]
    %v158 = vld [vmem:[%s5 + $0x60] sm:$0xff]
    %v159 = vld [vmem:[%s5 + $0x68] sm:$0xff]
    %v160 = vld [vmem:[%s5 + $0x70] sm:$0xff]
    %v161 = vld [vmem:[%s5 + $0x78] sm:$0xff]
    %v162 = vld [vmem:[%s6] sm:$0x1]
    %v164 = vperm.slane %v162, 0
    %166 = vmatpush.msra.mxu0 %v161
    %167 = vmatpush.msra.mxu0 %v160
    %168 = vmatpush.msra.mxu0 %v159
    %169 = vmatpush.msra.mxu0 %v158
    %170 = vmatpush.msra.mxu0 %v157
    %171 = vmatpush.msra.mxu0 %v156
    %172 = vmatpush.msra.mxu0 %v155
    %173 = vmatpush.msra.mxu0 %v154
    %174 = vmatpush.msra.mxu0 %v153
    %175 = vmatpush.msra.mxu0 %v152
    %176 = vmatpush.msra.mxu0 %v151
    %177 = vmatpush.msra.mxu0 %v150
    %178 = vmatpush.msra.mxu0 %v149
    %179 = vmatpush.msra.mxu0 %v148
    %180 = vmatpush.msra.mxu0 %v147
    %181 = vmatpush.msra.mxu0 %v146
    %182 = vmatmul.f32.gmra.mxu0 %v144
    %v183 = vpop.f32.mrf.mxu0
    %v184 = vadd.f32 %v164, %v183
    %185 = vmatmul.f32.gmra.mxu0 %v145
    %v186 = vpop.f32.mrf.mxu0
    %v187 = vadd.f32 %v164, %v186
    %188 = vdwg.mxu0
    %v189 = vmul.f32 %v184, %v184
    %v190 = vmul.f32 %v187, %v187
    %vm191 = vcmask 195584
    %v192 = vsel %vm191, %v189, 0.0
    %193 = vadd.xlane.f32.xlu0 %v192
    %v194 = vpop.xlane.xlu0 %193
    %v195 = vsel %vm191, %v190, 0.0
    %196 = vadd.xlane.f32.xlu0 %v195
    %v197 = vpop.xlane.xlu0 %196
    %v198 = vmax.f32 %v194, 1e-24
    %v199 = vmax.f32 %v197, 1e-24
    %v200 = vrsqrt.pop %v198
    %v201 = vmul.f32 %v200, %v198
    %v202 = vmul.f32 %v201, %v200
    %v203 = vmul.f32 0.5, %v202
    %v204 = vsub.f32 1.5, %v203
    %v205 = vmul.f32 %v200, %v204
    %vm206 = vweird.f32 %v198
    %vm207 = vweird.f32 %v200
    %vm208 = vmor %vm206, %vm207
    %v209 = vsel %vm208, %v200, %v205
    %v210 = vrsqrt.pop %v199
    %v211 = vmul.f32 %v210, %v199
    %v212 = vmul.f32 %v211, %v210
    %v213 = vmul.f32 0.5, %v212
    %v214 = vsub.f32 1.5, %v213
    %v215 = vmul.f32 %v210, %v214
    %vm216 = vweird.f32 %v199
    %vm217 = vweird.f32 %v210
    %vm218 = vmor %vm216, %vm217
    %v219 = vsel %vm218, %v210, %v215
    %v220 = vmul.f32 %v184, %v209
    %v221 = vmul.f32 %v187, %v219
    %222 = vst.msk [vmem:[#allocation5] sm:$0xff] %vm191, %v220
    %223 = vst.msk [vmem:[#allocation5 + $0x8] sm:$0xff] %vm191, %v221
    // Predicated region
    $region34: #{clencoder_forward.1} parent=1 // pred_check
      _
    $region35: #{clencoder_forward.1} parent=1 // pred_check_branch
      %225 = sbr.rel (0) target = $region37
    $region36: #{clencoder_forward.1} parent=1 // pred_region
      %227 = vsyncadd [#allocation4], 128
      %s228 = sshll.u32 [#allocation5], 4
      %s229 = int_to_ptr.vmem [resolvable:$true] %s228
      %s230 = sshll.u32 %s7, 4
      %s231 = int_to_ptr.hbm [resolvable:$true] %s230
      %236 = dma.vmem_to_hbm [thread:$0]  %s229, 128, %s231, [#allocation4], 128, 128, 8
    $region37: #{clencoder_forward.1} parent=1 // pred_fallthru
      _
    // Predicated region
    $region38: #{clencoder_forward.1} parent=1 // pred_check
      _
    $region39: #{clencoder_forward.1} parent=1 // pred_check_branch
      %238 = sbr.rel (0) target = $region41
    $region40: #{clencoder_forward.1} parent=1 // pred_region
      %240 = dma.done [#allocation4], 256
    $region41: #{clencoder_forward.1} parent=1 // pred_fallthru
      _
    %241 = vsyncpa [#allocation3], 1
    %242 = vsyncpa [#allocation4], 1

</llo_original>
